<compile_context>
chip_gen: v7x
topology: tpu7x:2x2x1
jax: 0.10.0
libtpu: 0.0.40
codegen_flags: <defaults>
</compile_context>

<pallas_src>
import math

import jax
import jax.numpy as jnp
from jax.experimental import pallas as pl
from jax.experimental.pallas import tpu as pltpu


_LEAKY_SLOPE = 0.2
_DROPOUT_P = 0.5
_LANE = 128


def _i32_const(v):
    """Python int -> wrapped int32 constant (two's complement)."""
    return jnp.int32(((int(v) & 0xFFFFFFFF) ^ 0x80000000) - 0x80000000)


def _keep_mask(seed_i32, layer_salt, row0_i32, shape, threshold31):
    """Deterministic counter-based keep-mask.

    Stream is a pure function of (seed, layer, absolute row, col), so it is
    independent of tiling / core assignment and different seeds / layers get
    disjoint streams.  Uses only int32 ops (mul/add/xor/ashr/and/compare) that
    lower on TPU Mosaic *and* in interpret mode.  keep-prob = 1 - p, decided
    on the low 31 (uniform) bits of the hash.
    """
    r = jax.lax.broadcasted_iota(jnp.int32, shape, 0) + row0_i32
    c = jax.lax.broadcasted_iota(jnp.int32, shape, 1)
    x = r * _i32_const(0x9E3779B9) + c * _i32_const(0x85EBCA6B)
    x = x ^ (seed_i32 + layer_salt)
    x = (x ^ (x >> 16)) * _i32_const(0x7FEB352D)
    x = (x ^ (x >> 15)) * _i32_const(0x846CA68B)
    x = x ^ (x >> 16)
    bits31 = x & jnp.int32(0x7FFFFFFF)          # 31 uniform-ish bits, >= 0
    return bits31 >= jnp.int32(threshold31)     # P(keep) = 1 - p


# ------------------------------ kernel ------------------------------------ #

def _make_discriminator_kernel(n_hidden, training,
                               dropout_p=_DROPOUT_P,
                               negative_slope=_LEAKY_SLOPE):
    """Fused kernel: n_hidden x (Linear -> LeakyReLU -> Dropout) + Linear(., 1).

    Ref order: seed, x, wt_0, b_0, ..., wt_{n_hidden}, b_{n_hidden}, out.
    Hidden weights are pre-transposed + zero-padded (in_pad, out_pad) bf16,
    biases (1, out_pad) f32.  The final Linear(dim, 1) weight is a
    (1, in_pad) bf16 row and its bias a (1, 1) f32 scalar.
    """
    use_dropout = bool(training) and dropout_p > 0.0
    threshold31 = min(int(round(dropout_p * (2.0 ** 31))), 2 ** 31 - 1)

    def kernel(seed_ref, x_ref, *refs):
        out_ref = refs[-1]
        wb = refs[:-1]
        tile_n = x_ref.shape[0]

        if use_dropout:
            seed = seed_ref[0]
            row0 = pl.program_id(0) * tile_n   # absolute row offset of this tile

        h = x_ref[...]                                          # (tile_n, 128) bf16
        for l in range(n_hidden):                               # unrolled at trace time
            wt = wb[2 * l][...]                                 # (in_pad, out_pad) bf16
            b = wb[2 * l + 1][...]                              # (1, out_pad) f32
            z = jnp.dot(h, wt, preferred_element_type=jnp.float32) + b
            # LeakyReLU(0.2) in f32 (v5e VPU has no bf16).
            z = jnp.where(z >= 0.0, z, negative_slope * z)
            if use_dropout:
                # 1/(1-p) keep-scale is folded into the NEXT layer's weights
                # by the wrapper, so dropout here is a pure select.
                keep = _keep_mask(seed, _i32_const((l + 1) * 0x27D4EB2F),
                                  row0, z.shape, threshold31)
                z = jnp.where(keep, z, 0.0)
            h = z.astype(jnp.bfloat16)                          # bf16 MXU operand
        # Final Linear(dim, 1): lane-wise multiply + XLU reduce
        # (avoids a degenerate N=1 MXU matmul).
        w_row = wb[2 * n_hidden][...].astype(jnp.float32)       # (1, in_pad)
        b_last = wb[2 * n_hidden + 1][...]                      # (1, 1)
        out_ref[...] = (jnp.sum(h.astype(jnp.float32) * w_row,
                                axis=-1, keepdims=True) + b_last)

    return kernel


# ------------------------------ wrapper ------------------------------------ #

def _pad128(n):
    return ((n + _LANE - 1) // _LANE) * _LANE


def init_discriminator_params(key, input_dim, dis_dims, pack=10):
    """Mirror nn.Linear default init (U(-k, k), k=1/sqrt(fan_in)).

    Hidden weights are stored PRE-TRANSPOSED and zero-padded to
    (pad128(in), pad128(out)) bfloat16; biases (1, pad128(out)) float32.
    The final Linear(dim, 1) is stored as a (1, pad128(in)) bf16 row plus a
    (1, 1) f32 bias.  Zero padding is exact through LeakyReLU / Dropout, so
    forward semantics are unchanged.
    """
    layers = []
    dim = input_dim * pack
    for out_dim in tuple(dis_dims):
        key, kw, kb = jax.random.split(key, 3)
        bound = 1.0 / math.sqrt(dim)
        wt = jax.random.uniform(kw, (dim, out_dim), jnp.float32, -bound, bound)
        b = jax.random.uniform(kb, (1, out_dim), jnp.float32, -bound, bound)
        wt_p = jnp.zeros((_pad128(dim), _pad128(out_dim)), jnp.float32)
        wt_p = wt_p.at[:dim, :out_dim].set(wt)
        b_p = jnp.zeros((1, _pad128(out_dim)), jnp.float32).at[:, :out_dim].set(b)
        layers.append((wt_p.astype(jnp.bfloat16), b_p))
        dim = out_dim
    # Final Linear(dim, 1)
    key, kw, kb = jax.random.split(key, 3)
    bound = 1.0 / math.sqrt(dim)
    w = jax.random.uniform(kw, (dim, 1), jnp.float32, -bound, bound)
    b = jax.random.uniform(kb, (1, 1), jnp.float32, -bound, bound)
    w_row = jnp.zeros((1, _pad128(dim)), jnp.float32).at[:, :dim].set(w[:, 0][None, :])
    layers.append((w_row.astype(jnp.bfloat16), b))
    return layers


def _choose_tile_rows(n_rows):
    """Fat tiles (per-step grid overhead ~0.35us dominates small tiles), but
    keep >= 2 grid steps when n_rows > 8 so "parallel" can split across the
    two v7x TensorCores.  Multiple of 8 (sublane) unless it equals n_rows.
    Cap 512 -- sweepable; VMEM is nowhere near a limit at these sizes."""
    if n_rows <= 8:
        return n_rows
    cap = 512
    return min(cap, max(8, ((n_rows // 2) // 8) * 8))


def discriminator_forward(layers, x, seed, *, pack, training=False):
    """x: (N, input_dim) with N % pack == 0.  Returns (N // pack, 1) float32."""
    n, input_dim = x.shape
    assert n % pack == 0, (n, pack)
    packdim = input_dim * pack
    n_rows = n // pack
    in_pad = layers[0][0].shape[0]
    n_hidden = len(layers) - 1

    # Pack rows, zero-pad features to the lane width, cast to bf16 (x is the
    # only HBM-proportional input; bf16 halves its read bytes).
    xp = x.reshape(n_rows, packdim)
    if in_pad != packdim:
        xp = jnp.pad(xp, ((0, 0), (0, in_pad - packdim)))
    xp = xp.astype(jnp.bfloat16)

    # Training: fold dropout's 1/(1-p) scale into the next layer's weights
    # (exact in bf16 for p=0.5), so the in-kernel dropout is a pure select.
    if training and _DROPOUT_P > 0.0:
        keep_scale = jnp.bfloat16(1.0 / (1.0 - _DROPOUT_P))
        layers = [layers[0]] + [(wt * keep_scale, b) for (wt, b) in layers[1:]]

    tile_n = _choose_tile_rows(n_rows)
    grid = (pl.cdiv(n_rows, tile_n),)
    # NOTE: if n_rows % tile_n != 0 the last tile computes on padded rows;
    # this is benign because rows are independent and padded outputs are
    # masked/discarded -- do not add cross-row reductions to this kernel.

    kernel = _make_discriminator_kernel(n_hidden, training)

    in_specs = [
        pl.BlockSpec(memory_space=pltpu.MemorySpace.SMEM),            # seed
        pl.BlockSpec((tile_n, in_pad), lambda i: (i, 0)),             # x tile
    ]
    flat_args = [jnp.asarray(seed, dtype=jnp.int32).reshape((1,)), xp]
    for (wt, b) in layers:
        # Constant index_map -> fetched once, resident across all grid steps.
        in_specs.append(pl.BlockSpec(wt.shape, lambda i: (0, 0)))
        in_specs.append(pl.BlockSpec(b.shape, lambda i: (0, 0)))
        flat_args.append(wt)
        flat_args.append(b)

    out_specs = pl.BlockSpec((tile_n, 1), lambda i: (i, 0))
    out_shape = jax.ShapeDtypeStruct((n_rows, 1), jnp.float32)

    return pl.pallas_call(
        kernel,
        grid=grid,
        in_specs=in_specs,
        out_specs=out_specs,
        out_shape=out_shape,
        compiler_params=pltpu.CompilerParams(
            dimension_semantics=("parallel",)),
    )(*flat_args)


# Pure-JAX reference (eval mode: Dropout is identity) mirroring the kernel's
# bf16-operand / f32-accumulate numerics, for the sanity check.
def discriminator_forward_ref(layers, x, pack):
    n, input_dim = x.shape
    packdim = input_dim * pack
    in_pad = layers[0][0].shape[0]
    h = x.reshape(-1, packdim)
    if in_pad != packdim:
        h = jnp.pad(h, ((0, 0), (0, in_pad - packdim)))
    h = h.astype(jnp.bfloat16)
    for (wt, b) in layers[:-1]:
        z = jnp.dot(h, wt, preferred_element_type=jnp.float32) + b
        z = jnp.where(z >= 0.0, z, _LEAKY_SLOPE * z)
        h = z.astype(jnp.bfloat16)
    w_row, b_last = layers[-1]
    return (jnp.sum(h.astype(jnp.float32) * w_row.astype(jnp.float32),
                    axis=-1, keepdims=True) + b_last)


# ------------------------------ main --------------------------------------- #

if __name__ == "__main__":
    input_dim = 8
    dis_dims = (64, 32)
    pack = 10
    batch = 20                      # must be divisible by pack

    key = jax.random.PRNGKey(0)
    key, kx = jax.random.split(key)
    x = jax.random.normal(kx, (batch, input_dim), jnp.float32)
    layers = init_discriminator_params(key, input_dim, dis_dims, pack=pack)

    fwd = jax.jit(discriminator_forward, static_argnames=("pack", "training"))

    # Eval-mode forward (Dropout = identity): checked against pure-JAX ref.
    seed0 = jnp.array([0], dtype=jnp.int32)
    out_eval = jax.block_until_ready(
        fwd(layers, x, seed0, pack=pack, training=False))
    ref = discriminator_forward_ref(layers, x, pack)
    assert out_eval.shape == (batch // pack, 1), out_eval.shape
    assert jnp.allclose(out_eval, ref, atol=5e-3, rtol=5e-3), (
        float(jnp.max(jnp.abs(out_eval - ref))))

    # Training-mode forward: in-kernel deterministic counter-hash Dropout(0.5)
    # with the 1/(1-p) scale folded into the next layer's weights.  The mask
    # stream necessarily differs from torch's CPU/CUDA RNG, so only shape and
    # finiteness are checked here.
    out_train = jax.block_until_ready(
        fwd(layers, x, jnp.array([123], jnp.int32), pack=pack, training=True))
    assert out_train.shape == (batch // pack, 1), out_train.shape
    assert bool(jnp.all(jnp.isfinite(out_train)))

    print("KERNEL_OK")
</pallas_src>

<mosaic_0001>
module attributes {stable_mosaic.version = 11 : i64} {
  func.func @kernel(%arg0: i32, %arg1: memref<1xi32, #tpu.memory_space<smem>>, %arg2: memref<2x128xbf16, #tpu.memory_space<vmem>>, %arg3: memref<128x128xbf16, #tpu.memory_space<vmem>>, %arg4: memref<1x128xf32, #tpu.memory_space<vmem>>, %arg5: memref<128x128xbf16, #tpu.memory_space<vmem>>, %arg6: memref<1x128xf32, #tpu.memory_space<vmem>>, %arg7: memref<1x128xbf16, #tpu.memory_space<vmem>>, %arg8: memref<1x1xf32, #tpu.memory_space<vmem>>, %arg9: memref<2x1xf32, #tpu.memory_space<vmem>>) attributes {dimension_semantics = [#tpu.dimension_semantics<parallel>], iteration_bounds = array<i64: 1>, scalar_prefetch = 0 : i64, scratch_operands = 0 : i64, tpu.core_type = #tpu.core_type<tc>, window_params = [{transform_indices = @transform_0, window_bounds = array<i64: 1>}, {transform_indices = @transform_1, window_bounds = array<i64: 2, 128>}, {pipeline_mode = #tpu.pipeline_mode<synchronous>, transform_indices = @transform_2, window_bounds = array<i64: 128, 128>}, {pipeline_mode = #tpu.pipeline_mode<synchronous>, transform_indices = @transform_3, window_bounds = array<i64: 1, 128>}, {pipeline_mode = #tpu.pipeline_mode<synchronous>, transform_indices = @transform_4, window_bounds = array<i64: 128, 128>}, {pipeline_mode = #tpu.pipeline_mode<synchronous>, transform_indices = @transform_5, window_bounds = array<i64: 1, 128>}, {pipeline_mode = #tpu.pipeline_mode<synchronous>, transform_indices = @transform_6, window_bounds = array<i64: 1, 128>}, {pipeline_mode = #tpu.pipeline_mode<synchronous>, transform_indices = @transform_7, window_bounds = array<i64: 1, 1>}, {transform_indices = @transform_8, window_bounds = array<i64: 2, 1>}]} {
    %c0 = arith.constant 0 : index
    %c0_0 = arith.constant 0 : index
    %0 = vector.load %arg2[%c0, %c0_0] : memref<2x128xbf16, #tpu.memory_space<vmem>>, vector<2x128xbf16>
    %c0_1 = arith.constant 0 : index
    %c0_2 = arith.constant 0 : index
    %1 = vector.load %arg3[%c0_1, %c0_2] : memref<128x128xbf16, #tpu.memory_space<vmem>>, vector<128x128xbf16>
    %c0_3 = arith.constant 0 : index
    %c0_4 = arith.constant 0 : index
    %2 = vector.load %arg4[%c0_3, %c0_4] : memref<1x128xf32, #tpu.memory_space<vmem>>, vector<1x128xf32>
    %cst = arith.constant dense<0.000000e+00> : vector<2x128xf32>
    %3 = tpu.matmul %0, %1, %cst {dimension_numbers = #tpu.dot_dimension_numbers<[1], [0], [0], [1], [0, 0, 1, 1], [], []>} : vector<2x128xbf16>, vector<128x128xbf16>, vector<2x128xf32> -> vector<2x128xf32>
    %4 = vector.broadcast %2 : vector<1x128xf32> to vector<2x128xf32>
    %5 = arith.addf %3, %4 : vector<2x128xf32>
    %cst_5 = arith.constant 0.000000e+00 : f32
    %6 = vector.broadcast %cst_5 : f32 to vector<2x128xf32>
    %7 = arith.cmpf oge, %5, %6 : vector<2x128xf32>
    %cst_6 = arith.constant 2.000000e-01 : f32
    %8 = vector.broadcast %cst_6 : f32 to vector<2x128xf32>
    %9 = arith.mulf %8, %5 : vector<2x128xf32>
    %10 = arith.select %7, %5, %9 : vector<2x128xi1>, vector<2x128xf32>
    %11 = arith.truncf %10 : vector<2x128xf32> to vector<2x128xbf16>
    %c0_7 = arith.constant 0 : index
    %c0_8 = arith.constant 0 : index
    %12 = vector.load %arg5[%c0_7, %c0_8] : memref<128x128xbf16, #tpu.memory_space<vmem>>, vector<128x128xbf16>
    %c0_9 = arith.constant 0 : index
    %c0_10 = arith.constant 0 : index
    %13 = vector.load %arg6[%c0_9, %c0_10] : memref<1x128xf32, #tpu.memory_space<vmem>>, vector<1x128xf32>
    %cst_11 = arith.constant dense<0.000000e+00> : vector<2x128xf32>
    %14 = tpu.matmul %11, %12, %cst_11 {dimension_numbers = #tpu.dot_dimension_numbers<[1], [0], [0], [1], [0, 0, 1, 1], [], []>} : vector<2x128xbf16>, vector<128x128xbf16>, vector<2x128xf32> -> vector<2x128xf32>
    %15 = vector.broadcast %13 : vector<1x128xf32> to vector<2x128xf32>
    %16 = arith.addf %14, %15 : vector<2x128xf32>
    %cst_12 = arith.constant 0.000000e+00 : f32
    %17 = vector.broadcast %cst_12 : f32 to vector<2x128xf32>
    %18 = arith.cmpf oge, %16, %17 : vector<2x128xf32>
    %cst_13 = arith.constant 2.000000e-01 : f32
    %19 = vector.broadcast %cst_13 : f32 to vector<2x128xf32>
    %20 = arith.mulf %19, %16 : vector<2x128xf32>
    %21 = arith.select %18, %16, %20 : vector<2x128xi1>, vector<2x128xf32>
    %22 = arith.truncf %21 : vector<2x128xf32> to vector<2x128xbf16>
    %c0_14 = arith.constant 0 : index
    %c0_15 = arith.constant 0 : index
    %23 = vector.load %arg7[%c0_14, %c0_15] : memref<1x128xbf16, #tpu.memory_space<vmem>>, vector<1x128xbf16>
    %24 = arith.extf %23 : vector<1x128xbf16> to vector<1x128xf32>
    %c0_16 = arith.constant 0 : index
    %c0_17 = arith.constant 0 : index
    %25 = vector.load %arg8[%c0_16, %c0_17] : memref<1x1xf32, #tpu.memory_space<vmem>>, vector<1x1xf32>
    %26 = arith.extf %22 : vector<2x128xbf16> to vector<2x128xf32>
    %27 = vector.broadcast %24 : vector<1x128xf32> to vector<2x128xf32>
    %28 = arith.mulf %26, %27 : vector<2x128xf32>
    %cst_18 = arith.constant dense<0.000000e+00> : vector<2xf32>
    %29 = vector.multi_reduction <add>, %28, %cst_18 [1] : vector<2x128xf32> to vector<2xf32>
    %30 = vector.shape_cast %29 : vector<2xf32> to vector<2x1xf32>
    %31 = vector.broadcast %25 : vector<1x1xf32> to vector<2x1xf32>
    %32 = arith.addf %30, %31 : vector<2x1xf32>
    %c0_19 = arith.constant 0 : index
    %c0_20 = arith.constant 0 : index
    %33 = vector.load %arg9[%c0_19, %c0_20] : memref<2x1xf32, #tpu.memory_space<vmem>>, vector<2x1xf32>
    tpu.vector_store %arg9[%c0_19, %c0_20], %32 {strides = array<i32>} : memref<2x1xf32, #tpu.memory_space<vmem>>, vector<2x1xf32>,
    return
  }
  func.func @transform_0(%arg0: i32) -> i32 {
    %c0_i32 = arith.constant 0 : i32
    %c0_i32_0 = arith.constant 0 : i32
    return %c0_i32 : i32
  }
  func.func @transform_1(%arg0: i32) -> (i32, i32) {
    %c0_i32 = arith.constant 0 : i32
    %c0_i32_0 = arith.constant 0 : i32
    return %arg0, %c0_i32 : i32, i32
  }
  func.func @transform_2(%arg0: i32) -> (i32, i32) {
    %c0_i32 = arith.constant 0 : i32
    %c0_i32_0 = arith.constant 0 : i32
    %c0_i32_1 = arith.constant 0 : i32
    return %c0_i32, %c0_i32_0 : i32, i32
  }
  func.func @transform_3(%arg0: i32) -> (i32, i32) {
    %c0_i32 = arith.constant 0 : i32
    %c0_i32_0 = arith.constant 0 : i32
    %c0_i32_1 = arith.constant 0 : i32
    return %c0_i32, %c0_i32_0 : i32, i32
  }
  func.func @transform_4(%arg0: i32) -> (i32, i32) {
    %c0_i32 = arith.constant 0 : i32
    %c0_i32_0 = arith.constant 0 : i32
    %c0_i32_1 = arith.constant 0 : i32
    return %c0_i32, %c0_i32_0 : i32, i32
  }
  func.func @transform_5(%arg0: i32) -> (i32, i32) {
    %c0_i32 = arith.constant 0 : i32
    %c0_i32_0 = arith.constant 0 : i32
    %c0_i32_1 = arith.constant 0 : i32
    return %c0_i32, %c0_i32_0 : i32, i32
  }
  func.func @transform_6(%arg0: i32) -> (i32, i32) {
    %c0_i32 = arith.constant 0 : i32
    %c0_i32_0 = arith.constant 0 : i32
    %c0_i32_1 = arith.constant 0 : i32
    return %c0_i32, %c0_i32_0 : i32, i32
  }
  func.func @transform_7(%arg0: i32) -> (i32, i32) {
    %c0_i32 = arith.constant 0 : i32
    %c0_i32_0 = arith.constant 0 : i32
    %c0_i32_1 = arith.constant 0 : i32
    return %c0_i32, %c0_i32_0 : i32, i32
  }
  func.func @transform_8(%arg0: i32) -> (i32, i32) {
    %c0_i32 = arith.constant 0 : i32
    %c0_i32_0 = arith.constant 0 : i32
    return %arg0, %c0_i32 : i32, i32
  }
}

</mosaic_0001>

<llo_original>
// kernel: discriminator_forward.1
$region0: #{discriminator_forward.1}
  #allocation0 [shape = 'u32[]', space=smem, size = 0x4, offset = 0x4, fixed_abs, tag = 'smem constant byte address 0x4 - core index']
  #allocation1 [shape = 'u32[144,128]{1,0:T(1,128)}', space=vmem, size = 0x12000, scoped, tag = 'internal scratch']
  #allocation2 [shape = 's32[1]{0:T(128)S(6)}', space=smem, size = 0x200, scoped, tag = 'scoped memory for discriminator_forward.1']
  #allocation3 [shape = 'f32[1,1]{1,0:T(1,128)S(1)}', space=vmem, size = 0x200, scoped, tag = 'scoped memory for discriminator_forward.1']
  %s0 = inlined_call_operand.<no memory space> [shape: s32[1], index: 0, kind: input, shape index: {}]
  %s1 = inlined_call_operand.vmem [shape: bf16[2,128], index: 1, kind: input, shape index: {}]
  %s2 = inlined_call_operand.vmem [shape: bf16[128,128], index: 2, kind: input, shape index: {}]
  %s3 = inlined_call_operand.vmem [shape: f32[1,128], index: 3, kind: input, shape index: {}]
  %s4 = inlined_call_operand.hbm [shape: bf16[128,128], index: 4, kind: input, shape index: {}]
  %s5 = inlined_call_operand.vmem [shape: f32[1,128], index: 5, kind: input, shape index: {}]
  %s6 = inlined_call_operand.vmem [shape: bf16[1,128], index: 6, kind: input, shape index: {}]
  %s7 = inlined_call_operand.<no memory space> [shape: f32[1,1], index: 7, kind: input, shape index: {}]
  %s8 = inlined_call_operand.vmem [shape: f32[2,1], index: 8, kind: output, shape index: {}]
  %s9 = sld [smem:[#allocation0]]
  $region46: #{discriminator_forward.1} parent=0
    _
  %s11 = ssub.s32 1, %s9
  %s12 = scalar_select 0, %s11, %s9
  %13 = sst [smem:[#allocation2]] %s0
  %v14 = vstv %s7
  %15 = vst [vmem:[#allocation3] sm:$0x1] %v14
  $region1: #{discriminator_forward.1} parent=0
    #allocation4 [shape = 'u8[32768]{0}', space=vmem, size = 0x8000, scoped, tag = 'input window, operand 4, single buffered']
    #allocation5 [shape = 's32[1]{0}', space=sflag, size = 0x4, scoped, tag = 'scoped memory for discriminator_forward.1']
    %16 = vsyncpa [#allocation5], 0
    // Predicated region
    $region2: #{discriminator_forward.1} parent=1 // pred_check
      _
    $region3: #{discriminator_forward.1} parent=1 // pred_check_branch
      %18 = sbr.rel (0) target = $region5
    $region4: #{discriminator_forward.1} parent=1 // pred_region
      _
    $region5: #{discriminator_forward.1} parent=1 // pred_fallthru
      _
    // Predicated region
    $region6: #{discriminator_forward.1} parent=1 // pred_check
      _
    $region7: #{discriminator_forward.1} parent=1 // pred_check_branch
      %20 = sbr.rel (0) target = $region9
    $region8: #{discriminator_forward.1} parent=1 // pred_region
      _
    $region9: #{discriminator_forward.1} parent=1 // pred_fallthru
      _
    // Predicated region
    $region10: #{discriminator_forward.1} parent=1 // pred_check
      _
    $region11: #{discriminator_forward.1} parent=1 // pred_check_branch
      %22 = sbr.rel (0) target = $region13
    $region12: #{discriminator_forward.1} parent=1 // pred_region
      _
    $region13: #{discriminator_forward.1} parent=1 // pred_fallthru
      _
    // Predicated region
    $region14: #{discriminator_forward.1} parent=1 // pred_check
      _
    $region15: #{discriminator_forward.1} parent=1 // pred_check_branch
      %24 = sbr.rel (0) target = $region17
    $region16: #{discriminator_forward.1} parent=1 // pred_region
      _
    $region17: #{discriminator_forward.1} parent=1 // pred_fallthru
      _
    // Predicated region
    $region18: #{discriminator_forward.1} parent=1 // pred_check
      _
    $region19: #{discriminator_forward.1} parent=1 // pred_check_branch
      %26 = sbr.rel (0) target = $region21
    $region20: #{discriminator_forward.1} parent=1 // pred_region
      %s28 = ssub.s32 1024, 1024
      %29 = vsyncadd [#allocation5], %s28
      %s30 = sshll.u32 [#allocation4], 4
      %s31 = int_to_ptr.vmem [resolvable:$true] %s30
      %36 = dma.hbm_to_vmem [thread:$0]  %s4, 1024, %s31, [#allocation5], 64, 64, 4
    $region21: #{discriminator_forward.1} parent=1 // pred_fallthru
      _
    // Predicated region
    $region22: #{discriminator_forward.1} parent=1 // pred_check
      _
    $region23: #{discriminator_forward.1} parent=1 // pred_check_branch
      %38 = sbr.rel (0) target = $region25
    $region24: #{discriminator_forward.1} parent=1 // pred_region
      _
    $region25: #{discriminator_forward.1} parent=1 // pred_fallthru
      _
    // Predicated region
    $region26: #{discriminator_forward.1} parent=1 // pred_check
      _
    $region27: #{discriminator_forward.1} parent=1 // pred_check_branch
      %40 = sbr.rel (0) target = $region29
    $region28: #{discriminator_forward.1} parent=1 // pred_region
      _
    $region29: #{discriminator_forward.1} parent=1 // pred_fallthru
      _
    // Predicated region
    $region30: #{discriminator_forward.1} parent=1 // pred_check
      _
    $region31: #{discriminator_forward.1} parent=1 // pred_check_branch
      %42 = sbr.rel (0) target = $region33
    $region32: #{discriminator_forward.1} parent=1 // pred_region
      _
    $region33: #{discriminator_forward.1} parent=1 // pred_fallthru
      _
    // Predicated region
    $region34: #{discriminator_forward.1} parent=1 // pred_check
      _
    $region35: #{discriminator_forward.1} parent=1 // pred_check_branch
      %44 = sbr.rel (0) target = $region37
    $region36: #{discriminator_forward.1} parent=1 // pred_region
      %45 = dma.done [#allocation5], 1024
    $region37: #{discriminator_forward.1} parent=1 // pred_fallthru
      _
    %v47 = vld [vmem:[%s1] sm:$0x1]
    %v48 = vld [vmem:[%s2] sm:$0xf]
    %v49 = vld [vmem:[%s2 + $0x4] sm:$0xf]
    %v50 = vld [vmem:[%s2 + $0x8] sm:$0xf]
    %v51 = vld [vmem:[%s2 + $0xc] sm:$0xf]
    %v52 = vld [vmem:[%s2 + $0x10] sm:$0xf]
    %v53 = vld [vmem:[%s2 + $0x14] sm:$0xf]
    %v54 = vld [vmem:[%s2 + $0x18] sm:$0xf]
    %v55 = vld [vmem:[%s2 + $0x1c] sm:$0xf]
    %v56 = vld [vmem:[%s2 + $0x20] sm:$0xf]
    %v57 = vld [vmem:[%s2 + $0x24] sm:$0xf]
    %v58 = vld [vmem:[%s2 + $0x28] sm:$0xf]
    %v59 = vld [vmem:[%s2 + $0x2c] sm:$0xf]
    %v60 = vld [vmem:[%s2 + $0x30] sm:$0xf]
    %v61 = vld [vmem:[%s2 + $0x34] sm:$0xf]
    %v62 = vld [vmem:[%s2 + $0x38] sm:$0xf]
    %v63 = vld [vmem:[%s2 + $0x3c] sm:$0xf]
    %v64 = vld [vmem:[%s3] sm:$0x1]
    %v66 = vlaneseq
    %v67 = vshrl.u32 %v66, 7
    %v68 = vsub.s32 0, %v67
    %v69 = vrot.slane %v64, %v68
    %v87 = vunpack.c.l.b16 %v48
    %v88 = vunpack.c.l.b16 %v49
    %v89 = vunpack.c.l.b16 %v50
    %v90 = vunpack.c.l.b16 %v51
    %v91 = vunpack.c.l.b16 %v52
    %v92 = vunpack.c.l.b16 %v53
    %v93 = vunpack.c.l.b16 %v54
    %v94 = vunpack.c.l.b16 %v55
    %v95 = vunpack.c.l.b16 %v56
    %v96 = vunpack.c.l.b16 %v57
    %v97 = vunpack.c.l.b16 %v58
    %v98 = vunpack.c.l.b16 %v59
    %v99 = vunpack.c.l.b16 %v60
    %v100 = vunpack.c.l.b16 %v61
    %v101 = vunpack.c.l.b16 %v62
    %v102 = vunpack.c.l.b16 %v63
    %v103 = vpack.c.b16 %v88, %v87
    %v104 = vpack.c.b16 %v90, %v89
    %v105 = vpack.c.b16 %v92, %v91
    %v106 = vpack.c.b16 %v94, %v93
    %v107 = vpack.c.b16 %v96, %v95
    %v108 = vpack.c.b16 %v98, %v97
    %v109 = vpack.c.b16 %v100, %v99
    %v110 = vpack.c.b16 %v102, %v101
    %119 = vmatprep.subr.bf16.mxu0 0
    %120 = vmatpush1.bf16.msra.mxu0 %v103
    %121 = vmatprep.subr.bf16.mxu0 0
    %122 = vmatpush1.bf16.msra.mxu0 %v104
    %123 = vmatprep.subr.bf16.mxu0 0
    %124 = vmatpush1.bf16.msra.mxu0 %v105
    %125 = vmatprep.subr.bf16.mxu0 0
    %126 = vmatpush1.bf16.msra.mxu0 %v106
    %127 = vmatprep.subr.bf16.mxu0 0
    %128 = vmatpush1.bf16.msra.mxu0 %v107
    %129 = vmatprep.subr.bf16.mxu0 0
    %130 = vmatpush1.bf16.msra.mxu0 %v108
    %131 = vmatprep.subr.bf16.mxu0 0
    %132 = vmatpush1.bf16.msra.mxu0 %v109
    %133 = vmatprep.subr.bf16.mxu0 0
    %134 = vmatpush1.bf16.msra.mxu0 %v110
    %135 = vmatprep.subr.bf16.mxu0 0
    %136 = vmatpush1.bf16.msra.mxu0 0
    %137 = vmatprep.subr.bf16.mxu0 0
    %138 = vmatpush1.bf16.msra.mxu0 0
    %139 = vmatprep.subr.bf16.mxu0 0
    %140 = vmatpush1.bf16.msra.mxu0 0
    %141 = vmatprep.subr.bf16.mxu0 0
    %142 = vmatpush1.bf16.msra.mxu0 0
    %143 = vmatprep.subr.bf16.mxu0 0
    %144 = vmatpush1.bf16.msra.mxu0 0
    %145 = vmatprep.subr.bf16.mxu0 0
    %146 = vmatpush1.bf16.msra.mxu0 0
    %147 = vmatprep.subr.bf16.mxu0 0
    %148 = vmatpush1.bf16.msra.mxu0 0
    %149 = vmatprep.subr.bf16.mxu0 0
    %150 = vmatpush1.bf16.msra.mxu0 0
    %151 = vmatprep.mubr.bf16.mxu0 0
    %152 = vmatmul.mubr.bf16.gmra.mrb[0].mxu0 %v47
    %v153 = vpop.f32.mrb[0].mxu0
    %v154 = vadd.f32 %v69, %v153
    %v155 = vpop.f32.mrb[0].mxu0
    %v156 = vpop.f32.mrb[0].mxu0
    %v157 = vpop.f32.mrb[0].mxu0
    %158 = vdwg.mxu0
    %vm159 = vcmp.ge.f32.partialorder %v154, 0.0
    %v160 = vmul.f32 %v154, 0.2
    %v161 = vsel %vm159, %v154, %v160
    %v162 = vpack.c.bf16 %v161, %v161
    %v163 = vld [vmem:[#allocation4] sm:$0xf]
    %v164 = vld [vmem:[#allocation4 + $0x4] sm:$0xf]
    %v165 = vld [vmem:[#allocation4 + $0x8] sm:$0xf]
    %v166 = vld [vmem:[#allocation4 + $0xc] sm:$0xf]
    %v167 = vld [vmem:[#allocation4 + $0x10] sm:$0xf]
    %v168 = vld [vmem:[#allocation4 + $0x14] sm:$0xf]
    %v169 = vld [vmem:[#allocation4 + $0x18] sm:$0xf]
    %v170 = vld [vmem:[#allocation4 + $0x1c] sm:$0xf]
    %v171 = vld [vmem:[#allocation4 + $0x20] sm:$0xf]
    %v172 = vld [vmem:[#allocation4 + $0x24] sm:$0xf]
    %v173 = vld [vmem:[#allocation4 + $0x28] sm:$0xf]
    %v174 = vld [vmem:[#allocation4 + $0x2c] sm:$0xf]
    %v175 = vld [vmem:[#allocation4 + $0x30] sm:$0xf]
    %v176 = vld [vmem:[#allocation4 + $0x34] sm:$0xf]
    %v177 = vld [vmem:[#allocation4 + $0x38] sm:$0xf]
    %v178 = vld [vmem:[#allocation4 + $0x3c] sm:$0xf]
    %v179 = vld [vmem:[%s5] sm:$0x1]
    %v181 = vlaneseq
    %v182 = vshrl.u32 %v181, 7
    %v183 = vsub.s32 0, %v182
    %v184 = vrot.slane %v179, %v183
    %v202 = vunpack.c.l.b16 %v163
    %v203 = vunpack.c.l.b16 %v164
    %v204 = vunpack.c.l.b16 %v165
    %v205 = vunpack.c.l.b16 %v166
    %v206 = vunpack.c.l.b16 %v167
    %v207 = vunpack.c.l.b16 %v168
    %v208 = vunpack.c.l.b16 %v169
    %v209 = vunpack.c.l.b16 %v170
    %v210 = vunpack.c.l.b16 %v171
    %v211 = vunpack.c.l.b16 %v172
    %v212 = vunpack.c.l.b16 %v173
    %v213 = vunpack.c.l.b16 %v174
    %v214 = vunpack.c.l.b16 %v175
    %v215 = vunpack.c.l.b16 %v176
    %v216 = vunpack.c.l.b16 %v177
    %v217 = vunpack.c.l.b16 %v178
    %v218 = vpack.c.b16 %v203, %v202
    %v219 = vpack.c.b16 %v205, %v204
    %v220 = vpack.c.b16 %v207, %v206
    %v221 = vpack.c.b16 %v209, %v208
    %v222 = vpack.c.b16 %v211, %v210
    %v223 = vpack.c.b16 %v213, %v212
    %v224 = vpack.c.b16 %v215, %v214
    %v225 = vpack.c.b16 %v217, %v216
    %234 = vmatprep.subr.bf16.mxu0 0
    %235 = vmatpush1.bf16.msra.mxu0 %v218
    %236 = vmatprep.subr.bf16.mxu0 0
    %237 = vmatpush1.bf16.msra.mxu0 %v219
    %238 = vmatprep.subr.bf16.mxu0 0
    %239 = vmatpush1.bf16.msra.mxu0 %v220
    %240 = vmatprep.subr.bf16.mxu0 0
    %241 = vmatpush1.bf16.msra.mxu0 %v221
    %242 = vmatprep.subr.bf16.mxu0 0
    %243 = vmatpush1.bf16.msra.mxu0 %v222
    %244 = vmatprep.subr.bf16.mxu0 0
    %245 = vmatpush1.bf16.msra.mxu0 %v223
    %246 = vmatprep.subr.bf16.mxu0 0
    %247 = vmatpush1.bf16.msra.mxu0 %v224
    %248 = vmatprep.subr.bf16.mxu0 0
    %249 = vmatpush1.bf16.msra.mxu0 %v225
    %250 = vmatprep.subr.bf16.mxu0 0
    %251 = vmatpush1.bf16.msra.mxu0 0
    %252 = vmatprep.subr.bf16.mxu0 0
    %253 = vmatpush1.bf16.msra.mxu0 0
    %254 = vmatprep.subr.bf16.mxu0 0
    %255 = vmatpush1.bf16.msra.mxu0 0
    %256 = vmatprep.subr.bf16.mxu0 0
    %257 = vmatpush1.bf16.msra.mxu0 0
    %258 = vmatprep.subr.bf16.mxu0 0
    %259 = vmatpush1.bf16.msra.mxu0 0
    %260 = vmatprep.subr.bf16.mxu0 0
    %261 = vmatpush1.bf16.msra.mxu0 0
    %262 = vmatprep.subr.bf16.mxu0 0
    %263 = vmatpush1.bf16.msra.mxu0 0
    %264 = vmatprep.subr.bf16.mxu0 0
    %265 = vmatpush1.bf16.msra.mxu0 0
    %266 = vmatprep.mubr.bf16.mxu0 0
    %267 = vmatmul.mubr.bf16.gmra.mrb[0].mxu0 %v162
    %v268 = vpop.f32.mrb[0].mxu0
    %v269 = vadd.f32 %v184, %v268
    %v270 = vpop.f32.mrb[0].mxu0
    %v271 = vpop.f32.mrb[0].mxu0
    %v272 = vpop.f32.mrb[0].mxu0
    %273 = vdwg.mxu0
    %vm274 = vcmp.ge.f32.partialorder %v269, 0.0
    %v275 = vmul.f32 %v269, 0.2
    %v276 = vsel %vm274, %v269, %v275
    %v277 = vpack.c.bf16 %v276, %v276
    %v278 = vld [vmem:[%s6] sm:$0x1]
    %v279 = vunpack.c.l.bf16 %v278
    %v280 = vld [vmem:[#allocation3] sm:$0x1]
    %v281 = vunpack.c.l.bf16 %v277
    %v282 = vlaneseq
    %v283 = vshrl.u32 %v282, 7
    %v284 = vsub.s32 0, %v283
    %v285 = vrot.slane %v279, %v284
    %v286 = vmul.f32 %v281, %v285
    %vm287 = vcmask 1041408
    %v288 = vsel %vm287, %v286, 0.0
    %289 = vadd.xlane.f32.xlu0 %v288
    %v290 = vpop.xlane.xlu0 %289
    %v292 = vlaneseq
    %v293 = vshrl.u32 %v292, 7
    %v294 = vsub.s32 0, %v293
    %v295 = vrot.slane %v280, %v294
    %v297 = vadd.f32 %v290, %v295
    %vm298 = vcmask 1024
    %299 = vst.msk [vmem:[%s8] sm:$0x3] %vm298, %v297
    // Predicated region
    $region38: #{discriminator_forward.1} parent=1 // pred_check
      _
    $region39: #{discriminator_forward.1} parent=1 // pred_check_branch
      %301 = sbr.rel (0) target = $region41
    $region40: #{discriminator_forward.1} parent=1 // pred_region
      _
    $region41: #{discriminator_forward.1} parent=1 // pred_fallthru
      _
    // Predicated region
    $region42: #{discriminator_forward.1} parent=1 // pred_check
      _
    $region43: #{discriminator_forward.1} parent=1 // pred_check_branch
      %303 = sbr.rel (0) target = $region45
    $region44: #{discriminator_forward.1} parent=1 // pred_region
      _
    $region45: #{discriminator_forward.1} parent=1 // pred_fallthru
      _
    %304 = vsyncpa [#allocation5], 1

</llo_original>
